<compile_context>
chip_gen: v7x
topology: tpu7x:2x2x1
jax: 0.10.0
libtpu: 0.0.40
codegen_flags: <defaults>
</compile_context>

<pallas_src>
import functools

import jax
import jax.numpy as jnp
from jax.experimental import pallas as pl
from jax.experimental.pallas import tpu as pltpu

_LANE = 128
_SUBLANE = 8


def _round_up(x, m):
    return ((x + m - 1) // m) * m


def _vmem_capacity_bytes():
    try:
        return int(pltpu.get_tpu_info().vmem_capacity_bytes)
    except Exception:
        return 64 * 2**20  # conservative (v7x per-TensorCore)


# ---------------------------------------------------------------------------
# Kernels
# ---------------------------------------------------------------------------
def _softmaxnet_kernel_single(x_ref, w_ref, b_ref, o_ref):
    """nk == 1 fast path: whole K in one MXU pass, fused epilogue, no scratch."""
    z = jnp.dot(x_ref[...], w_ref[...], preferred_element_type=jnp.float32)
    z = z + b_ref[...]                      # (TB, N) + (1, N)
    s = 1.0 / (1.0 + jnp.exp(-z))           # sigmoid
    # exp without max-subtraction matches the torch module; safe because the
    # sigmoid output is in (0, 1) so exp cannot overflow.
    e = jnp.exp(s)
    part = jnp.sum(e, axis=1, keepdims=True)
    o_ref[...] = (e / part).astype(o_ref.dtype)


def _softmaxnet_kernel_tiled_k(x_ref, w_ref, b_ref, o_ref, acc_ref, *, tk, w_resident):
    """Large-K path: K reduction on a trailing 'arbitrary' grid axis with f32 accumulator."""
    k = pl.program_id(1)

    @pl.when(k == 0)
    def _():
        acc_ref[...] = jnp.zeros_like(acc_ref)

    if w_resident:
        start = pl.multiple_of(k * tk, tk)
        w_blk = w_ref[pl.ds(start, tk), :]   # slice the VMEM-resident weight
    else:
        w_blk = w_ref[...]                   # streamed (tk, N) slab
    acc_ref[...] += jnp.dot(x_ref[...], w_blk, preferred_element_type=jnp.float32)

    @pl.when(k == pl.num_programs(1) - 1)
    def _():
        z = acc_ref[...] + b_ref[...]
        s = 1.0 / (1.0 + jnp.exp(-z))
        e = jnp.exp(s)                       # safe: sigmoid output in (0, 1)
        part = jnp.sum(e, axis=1, keepdims=True)
        o_ref[...] = (e / part).astype(o_ref.dtype)


# ---------------------------------------------------------------------------
# Wrapper
# ---------------------------------------------------------------------------
def softmaxnet_forward(x, w, b, *, batch_tile=None):
    """x: any tensor flattened row-major to (-1, num_inputs) (== torch x.view(-1, K));
       w: (num_inputs, num_outputs); b: (num_outputs,). Returns (B, num_outputs)."""
    num_inputs, num_outputs = w.shape
    x2d = x.reshape(-1, num_inputs)
    B = x2d.shape[0]
    dtype = x2d.dtype
    itemsize = 4  # x/w streamed as f32 (matches the fp32 module).
    # NOTE: do NOT cast x to bf16 here -- a standalone cast is an extra HBM pass and is
    # net-negative; only stream bf16 if the upstream producer already emits it.

    # ---- Per-generation budgets -------------------------------------------
    vmem_cap = _vmem_capacity_bytes()          # 128 MiB v5e/v6e, 64 MiB v7x
    usable = int(0.80 * vmem_cap)
    if batch_tile is None:
        batch_tile = 2048 if vmem_cap >= 96 * 2**20 else 1024

    # ---- Batch tiling ------------------------------------------------------
    # Pad rows only up to a sublane multiple (8); grid uses cdiv so there is no
    # rounding of B up to TB (no wasted x DMA / MXU work on a ragged last tile).
    B_eff = _round_up(B, _SUBLANE)
    # Cap TB at ~half the batch so the "parallel" axis has >=2 steps (megacore on v7x).
    TB = max(_SUBLANE, min(batch_tile, _round_up(pl.cdiv(B_eff, 2), _SUBLANE)))
    nb = pl.cdiv(B_eff, TB)

    # ---- K tiling -----------------------------------------------------------
    # Keep double-buffered x tiles within roughly half of usable VMEM.
    x_budget = usable // 2
    k_fit = max(_LANE, x_budget // (2 * TB * itemsize))
    if num_inputs <= k_fit:
        nk, tk, K_pad = 1, num_inputs, num_inputs
    else:
        nk = pl.cdiv(num_inputs, k_fit)
        tk = _round_up(pl.cdiv(num_inputs, nk), _LANE)   # lane-aligned K tile
        K_pad = nk * tk

    # ---- Padding (only when genuinely needed) -------------------------------
    need_row_pad = (B_eff != B)
    need_k_pad = (K_pad != num_inputs)
    if need_row_pad or need_k_pad:
        x_p = jnp.pad(x2d, ((0, B_eff - B), (0, K_pad - num_inputs)))
    else:
        x_p = x2d                               # common case: zero-copy
    w_p = jnp.pad(w, ((0, K_pad - num_inputs), (0, 0))) if need_k_pad else w
    b2d = b.reshape(1, num_outputs)

    # ---- VMEM accounting (lane-padded layout, conservative) -----------------
    laneN = _round_up(num_outputs, _LANE)
    if nk == 1:
        est = itemsize * (2 * TB * K_pad        # x tiles (double-buffered)
                          + 2 * K_pad * laneN   # w (resident)
                          + 2 * laneN           # bias
                          + 2 * TB * laneN)     # output tiles
    else:
        w_resident = (K_pad * laneN * itemsize) <= usable // 8
        w_term = (2 * K_pad * laneN) if w_resident else (2 * tk * laneN)
        est = itemsize * (2 * TB * tk + w_term + 2 * laneN
                          + 2 * TB * laneN      # output tiles
                          + TB * laneN)         # f32 accumulator scratch
    vmem_limit = int(min(int(0.90 * vmem_cap), max(32 * 2**20, 2 * est)))

    # ---- pallas_call --------------------------------------------------------
    if nk == 1:
        out_padded = pl.pallas_call(
            _softmaxnet_kernel_single,
            out_shape=jax.ShapeDtypeStruct((B_eff, num_outputs), dtype),
            grid_spec=pltpu.PrefetchScalarGridSpec(
                num_scalar_prefetch=0,
                grid=(nb,),
                in_specs=[
                    pl.BlockSpec((TB, K_pad), lambda i: (i, 0)),          # x
                    pl.BlockSpec((K_pad, num_outputs), lambda i: (0, 0)), # w (resident)
                    pl.BlockSpec((1, num_outputs), lambda i: (0, 0)),     # b (resident)
                ],
                out_specs=pl.BlockSpec((TB, num_outputs), lambda i: (i, 0)),
            ),
            compiler_params=pltpu.CompilerParams(
                dimension_semantics=("parallel",),
                vmem_limit_bytes=vmem_limit,
            ),
        )(x_p, w_p, b2d)
    else:
        if w_resident:
            w_spec = pl.BlockSpec((K_pad, num_outputs), lambda i, k: (0, 0))
        else:
            w_spec = pl.BlockSpec((tk, num_outputs), lambda i, k: (k, 0))
        out_padded = pl.pallas_call(
            functools.partial(_softmaxnet_kernel_tiled_k, tk=tk, w_resident=w_resident),
            out_shape=jax.ShapeDtypeStruct((B_eff, num_outputs), dtype),
            grid_spec=pltpu.PrefetchScalarGridSpec(
                num_scalar_prefetch=0,
                grid=(nb, nk),
                in_specs=[
                    pl.BlockSpec((TB, tk), lambda i, k: (i, k)),          # x
                    w_spec,                                               # w
                    pl.BlockSpec((1, num_outputs), lambda i, k: (0, 0)),  # b
                ],
                out_specs=pl.BlockSpec((TB, num_outputs), lambda i, k: (i, 0)),
                scratch_shapes=[pltpu.VMEM((TB, num_outputs), jnp.float32)],
            ),
            compiler_params=pltpu.CompilerParams(
                dimension_semantics=("parallel", "arbitrary"),
                vmem_limit_bytes=vmem_limit,
            ),
        )(x_p, w_p, b2d)

    return out_padded if B_eff == B else out_padded[:B]


def init_params(key, num_inputs, num_outputs):
    # Mirrors the module: w is xavier_uniform_ (2-D param), b is zeros.
    limit = jnp.sqrt(6.0 / (num_inputs + num_outputs))
    w = jax.random.uniform(key, (num_inputs, num_outputs),
                           minval=-limit, maxval=limit, dtype=jnp.float32)
    b = jnp.zeros((num_outputs,), dtype=jnp.float32)
    return w, b


def _reference(x, w, b):
    x2d = x.reshape(-1, w.shape[0])
    z = x2d @ w + b
    s = jax.nn.sigmoid(z)
    e = jnp.exp(s)
    return e / jnp.sum(e, axis=1, keepdims=True)


if __name__ == "__main__":
    num_inputs = 64      # flattened (1, 8, 8) image
    num_outputs = 10

    key = jax.random.PRNGKey(0)
    kx, kw, kx2 = jax.random.split(key, 3)
    w, b = init_params(kw, num_inputs, num_outputs)

    # Small NCHW-style input that the module flattens to (-1, num_inputs).
    x = jax.random.normal(kx, (4, 1, 8, 8), dtype=jnp.float32)
    out = jax.block_until_ready(softmaxnet_forward(x, w, b))
    ref = _reference(x, w, b)
    assert out.shape == (4, num_outputs)
    assert jnp.allclose(out, ref, atol=1e-5, rtol=1e-5), float(jnp.max(jnp.abs(out - ref)))
    assert jnp.allclose(jnp.sum(out, axis=1), 1.0, atol=1e-5)

    # Sublane-aligned batch exercises the zero-copy (no jnp.pad) multi-tile path.
    x2 = jax.random.normal(kx2, (16, 1, 8, 8), dtype=jnp.float32)
    out2 = jax.block_until_ready(softmaxnet_forward(x2, w, b))
    ref2 = _reference(x2, w, b)
    assert out2.shape == (16, num_outputs)
    assert jnp.allclose(out2, ref2, atol=1e-5, rtol=1e-5), float(jnp.max(jnp.abs(out2 - ref2)))
    assert jnp.allclose(jnp.sum(out2, axis=1), 1.0, atol=1e-5)

    print("KERNEL_OK")
</pallas_src>

<mosaic_0001>
module attributes {stable_mosaic.version = 11 : i64} {
  func.func @_softmaxnet_kernel_single(%arg0: i32, %arg1: memref<8x64xf32, #tpu.memory_space<vmem>>, %arg2: memref<64x10xf32, #tpu.memory_space<vmem>>, %arg3: memref<1x10xf32, #tpu.memory_space<vmem>>, %arg4: memref<8x10xf32, #tpu.memory_space<vmem>>) attributes {dimension_semantics = [#tpu.dimension_semantics<parallel>], iteration_bounds = array<i64: 1>, scalar_prefetch = 0 : i64, scratch_operands = 0 : i64, tpu.core_type = #tpu.core_type<tc>, window_params = [{transform_indices = @transform_0, window_bounds = array<i64: 8, 64>}, {pipeline_mode = #tpu.pipeline_mode<synchronous>, transform_indices = @transform_1, window_bounds = array<i64: 64, 10>}, {pipeline_mode = #tpu.pipeline_mode<synchronous>, transform_indices = @transform_2, window_bounds = array<i64: 1, 10>}, {transform_indices = @transform_3, window_bounds = array<i64: 8, 10>}]} {
    %c0 = arith.constant 0 : index
    %c0_0 = arith.constant 0 : index
    %0 = vector.load %arg1[%c0, %c0_0] : memref<8x64xf32, #tpu.memory_space<vmem>>, vector<8x64xf32>
    %c0_1 = arith.constant 0 : index
    %c0_2 = arith.constant 0 : index
    %1 = vector.load %arg2[%c0_1, %c0_2] : memref<64x10xf32, #tpu.memory_space<vmem>>, vector<64x10xf32>
    %cst = arith.constant dense<0.000000e+00> : vector<8x10xf32>
    %2 = tpu.matmul %0, %1, %cst {dimension_numbers = #tpu.dot_dimension_numbers<[1], [0], [0], [1], [0, 0, 1, 1], [], []>} : vector<8x64xf32>, vector<64x10xf32>, vector<8x10xf32> -> vector<8x10xf32>
    %c0_3 = arith.constant 0 : index
    %c0_4 = arith.constant 0 : index
    %3 = vector.load %arg3[%c0_3, %c0_4] : memref<1x10xf32, #tpu.memory_space<vmem>>, vector<1x10xf32>
    %4 = vector.broadcast %3 : vector<1x10xf32> to vector<8x10xf32>
    %5 = arith.addf %2, %4 : vector<8x10xf32>
    %cst_5 = arith.constant 0.000000e+00 : f32
    %6 = vector.broadcast %cst_5 : f32 to vector<8x10xf32>
    %7 = arith.subf %6, %5 : vector<8x10xf32>
    %8 = math.exp %7 : vector<8x10xf32>
    %cst_6 = arith.constant 1.000000e+00 : f32
    %9 = vector.broadcast %cst_6 : f32 to vector<8x10xf32>
    %10 = arith.addf %9, %8 : vector<8x10xf32>
    %cst_7 = arith.constant 1.000000e+00 : f32
    %11 = vector.broadcast %cst_7 : f32 to vector<8x10xf32>
    %12 = arith.divf %11, %10 : vector<8x10xf32>
    %13 = math.exp %12 : vector<8x10xf32>
    %cst_8 = arith.constant dense<0.000000e+00> : vector<8xf32>
    %14 = vector.multi_reduction <add>, %13, %cst_8 [1] : vector<8x10xf32> to vector<8xf32>
    %15 = vector.shape_cast %14 : vector<8xf32> to vector<8x1xf32>
    %16 = vector.broadcast %15 : vector<8x1xf32> to vector<8x10xf32>
    %17 = arith.divf %13, %16 : vector<8x10xf32>
    %c0_9 = arith.constant 0 : index
    %c0_10 = arith.constant 0 : index
    %18 = vector.load %arg4[%c0_9, %c0_10] : memref<8x10xf32, #tpu.memory_space<vmem>>, vector<8x10xf32>
    tpu.vector_store %arg4[%c0_9, %c0_10], %17 {strides = array<i32>} : memref<8x10xf32, #tpu.memory_space<vmem>>, vector<8x10xf32>,
    return
  }
  func.func @transform_0(%arg0: i32) -> (i32, i32) {
    %c0_i32 = arith.constant 0 : i32
    %c0_i32_0 = arith.constant 0 : i32
    return %arg0, %c0_i32 : i32, i32
  }
  func.func @transform_1(%arg0: i32) -> (i32, i32) {
    %c0_i32 = arith.constant 0 : i32
    %c0_i32_0 = arith.constant 0 : i32
    %c0_i32_1 = arith.constant 0 : i32
    return %c0_i32, %c0_i32_0 : i32, i32
  }
  func.func @transform_2(%arg0: i32) -> (i32, i32) {
    %c0_i32 = arith.constant 0 : i32
    %c0_i32_0 = arith.constant 0 : i32
    %c0_i32_1 = arith.constant 0 : i32
    return %c0_i32, %c0_i32_0 : i32, i32
  }
  func.func @transform_3(%arg0: i32) -> (i32, i32) {
    %c0_i32 = arith.constant 0 : i32
    %c0_i32_0 = arith.constant 0 : i32
    return %arg0, %c0_i32 : i32, i32
  }
}

</mosaic_0001>

<llo_original>
// kernel: tpu_custom_call.1
$region0: #{tpu_custom_call.1}
  #allocation0 [shape = 'u32[]', space=smem, size = 0x4, offset = 0x4, fixed_abs, tag = 'smem constant byte address 0x4 - core index']
  #allocation1 [shape = 'u32[144,128]{1,0:T(1,128)}', space=vmem, size = 0x12000, scoped, tag = 'internal scratch']
  %s0 = inlined_call_operand.vmem [shape: f32[8,64], index: 0, kind: input, shape index: {}]
  %s1 = inlined_call_operand.vmem [shape: f32[64,10], index: 1, kind: input, shape index: {}]
  %s2 = inlined_call_operand.vmem [shape: f32[1,10], index: 2, kind: input, shape index: {}]
  %s3 = inlined_call_operand.hbm [shape: f32[8,10], index: 3, kind: output, shape index: {}]
  %s4 = sld [smem:[#allocation0]]
  $region22: #{tpu_custom_call.1} parent=0
    _
  %s6 = ssub.s32 1, %s4
  %s7 = scalar_select 0, %s6, %s4
  $region1: #{tpu_custom_call.1} parent=0
    #allocation2 [shape = 'u8[4096]{0}', space=vmem, size = 0x1000, scoped, tag = 'output window, operand 0, single buffered']
    #allocation3 [shape = 's32[1]{0}', space=sflag, size = 0x4, scoped, tag = 'scoped memory for tpu_custom_call.1']
    %8 = vsyncpa [#allocation3], 0
    // Predicated region
    $region2: #{tpu_custom_call.1} parent=1 // pred_check
      _
    $region3: #{tpu_custom_call.1} parent=1 // pred_check_branch
      %10 = sbr.rel (0) target = $region5
    $region4: #{tpu_custom_call.1} parent=1 // pred_region
      _
    $region5: #{tpu_custom_call.1} parent=1 // pred_fallthru
      _
    // Predicated region
    $region6: #{tpu_custom_call.1} parent=1 // pred_check
      _
    $region7: #{tpu_custom_call.1} parent=1 // pred_check_branch
      %12 = sbr.rel (0) target = $region9
    $region8: #{tpu_custom_call.1} parent=1 // pred_region
      _
    $region9: #{tpu_custom_call.1} parent=1 // pred_fallthru
      _
    // Predicated region
    $region10: #{tpu_custom_call.1} parent=1 // pred_check
      _
    $region11: #{tpu_custom_call.1} parent=1 // pred_check_branch
      %14 = sbr.rel (0) target = $region13
    $region12: #{tpu_custom_call.1} parent=1 // pred_region
      _
    $region13: #{tpu_custom_call.1} parent=1 // pred_fallthru
      _
    %v15 = vld [vmem:[%s0] sm:$0xff]
    %v16 = vld [vmem:[%s1] sm:$0xff]
    %v17 = vld [vmem:[%s1 + $0x8] sm:$0xff]
    %v18 = vld [vmem:[%s1 + $0x10] sm:$0xff]
    %v19 = vld [vmem:[%s1 + $0x18] sm:$0xff]
    %v20 = vld [vmem:[%s1 + $0x20] sm:$0xff]
    %v21 = vld [vmem:[%s1 + $0x28] sm:$0xff]
    %v22 = vld [vmem:[%s1 + $0x30] sm:$0xff]
    %v23 = vld [vmem:[%s1 + $0x38] sm:$0xff]
    %v24 = vld [vmem:[%s2] sm:$0x1]
    %v26 = vlaneseq
    %v27 = vshrl.u32 %v26, 7
    %v28 = vsub.s32 0, %v27
    %v29 = vrot.slane %v24, %v28
    %vm31 = vcmask 523264
    %v33 = vsel %vm31, %v15, 0
    %35 = vmatprep.subr.mxu0 0.0
    %36 = vmatpush1.msra.mxu0 %v16
    %37 = vmatprep.subr.mxu0 0.0
    %38 = vmatpush1.msra.mxu0 %v17
    %39 = vmatprep.subr.mxu0 0.0
    %40 = vmatpush1.msra.mxu0 %v18
    %41 = vmatprep.subr.mxu0 0.0
    %42 = vmatpush1.msra.mxu0 %v19
    %43 = vmatprep.subr.mxu0 0.0
    %44 = vmatpush1.msra.mxu0 %v20
    %45 = vmatprep.subr.mxu0 0.0
    %46 = vmatpush1.msra.mxu0 %v21
    %47 = vmatprep.subr.mxu0 0.0
    %48 = vmatpush1.msra.mxu0 %v22
    %49 = vmatprep.subr.mxu0 0.0
    %50 = vmatpush1.msra.mxu0 %v23
    %51 = vmatprep.subr.mxu0 0.0
    %52 = vmatpush1.msra.mxu0 0.0
    %53 = vmatprep.subr.mxu0 0.0
    %54 = vmatpush1.msra.mxu0 0.0
    %55 = vmatprep.subr.mxu0 0.0
    %56 = vmatpush1.msra.mxu0 0.0
    %57 = vmatprep.subr.mxu0 0.0
    %58 = vmatpush1.msra.mxu0 0.0
    %59 = vmatprep.subr.mxu0 0.0
    %60 = vmatpush1.msra.mxu0 0.0
    %61 = vmatprep.subr.mxu0 0.0
    %62 = vmatpush1.msra.mxu0 0.0
    %63 = vmatprep.subr.mxu0 0.0
    %64 = vmatpush1.msra.mxu0 0.0
    %65 = vmatprep.subr.mxu0 0.0
    %66 = vmatpush1.msra.mxu0 0.0
    %67 = vmatprep.subr.mxu0 0.0
    %68 = vmatpush1.msra.mxu0 0.0
    %69 = vmatprep.subr.mxu0 0.0
    %70 = vmatpush1.msra.mxu0 0.0
    %71 = vmatprep.subr.mxu0 0.0
    %72 = vmatpush1.msra.mxu0 0.0
    %73 = vmatprep.subr.mxu0 0.0
    %74 = vmatpush1.msra.mxu0 0.0
    %75 = vmatprep.subr.mxu0 0.0
    %76 = vmatpush1.msra.mxu0 0.0
    %77 = vmatprep.subr.mxu0 0.0
    %78 = vmatpush1.msra.mxu0 0.0
    %79 = vmatprep.subr.mxu0 0.0
    %80 = vmatpush1.msra.mxu0 0.0
    %81 = vmatprep.subr.mxu0 0.0
    %82 = vmatpush1.msra.mxu0 0.0
    %83 = vmatprep.subr.mxu0 0.0
    %84 = vmatpush1.msra.mxu0 0.0
    %85 = vmatprep.subr.mxu0 0.0
    %86 = vmatpush1.msra.mxu0 0.0
    %87 = vmatprep.subr.mxu0 0.0
    %88 = vmatpush1.msra.mxu0 0.0
    %89 = vmatprep.subr.mxu0 0.0
    %90 = vmatpush1.msra.mxu0 0.0
    %91 = vmatprep.subr.mxu0 0.0
    %92 = vmatpush1.msra.mxu0 0.0
    %93 = vmatprep.subr.mxu0 0.0
    %94 = vmatpush1.msra.mxu0 0.0
    %95 = vmatprep.subr.mxu0 0.0
    %96 = vmatpush1.msra.mxu0 0.0
    %97 = vmatprep.subr.mxu0 0.0
    %98 = vmatpush1.msra.mxu0 0.0
    %99 = vmatprep.mubr.f32.mxu0 0.0
    %100 = vmatmul.mubr.f32.gmra.mrb[0].mxu0 %v33
    %v101 = vpop.f32.mrb[0].mxu0
    %v102 = vadd.f32 %v29, %v101
    %v103 = vpop.f32.mrb[0].mxu0
    %104 = vdwg.mxu0
    %v105 = vsub.f32 0.0, %v102
    %v106 = vmul.f32 %v105, 1.442695
    %v107 = vpow.pop %v106
    %v108 = vadd.f32 %v107, 1.0
    %v109 = vrcp.pop %v108
    %v110 = vmul.f32 1.0, %v109
    %v111 = vmul.f32 %v110, 1.442695
    %v112 = vpow.pop %v111
    %vm113 = vcmask 80896
    %v114 = vsel %vm113, %v112, 0.0
    %115 = vadd.xlane.f32.xlu0 %v114
    %v116 = vpop.xlane.xlu0 %115
    %v117 = vrcp.pop %v116
    %v118 = vmul.f32 %v112, %v117
    %119 = vst.msk [vmem:[#allocation2] sm:$0xff] %vm113, %v118
    // Predicated region
    $region14: #{tpu_custom_call.1} parent=1 // pred_check
      _
    $region15: #{tpu_custom_call.1} parent=1 // pred_check_branch
      %121 = sbr.rel (0) target = $region17
    $region16: #{tpu_custom_call.1} parent=1 // pred_region
      %s123 = ssub.s32 128, 128
      %124 = vsyncadd [#allocation3], %s123
      %s126 = sshll.u32 [#allocation2], 4
      %s127 = int_to_ptr.vmem [resolvable:$true] %s126
      %129 = dma.vmem_to_hbm [thread:$0]  %s127, 128, %s3, [#allocation3]
    $region17: #{tpu_custom_call.1} parent=1 // pred_fallthru
      _
    // Predicated region
    $region18: #{tpu_custom_call.1} parent=1 // pred_check
      _
    $region19: #{tpu_custom_call.1} parent=1 // pred_check_branch
      %131 = sbr.rel (0) target = $region21
    $region20: #{tpu_custom_call.1} parent=1 // pred_region
      %132 = dma.done [#allocation3], 128
    $region21: #{tpu_custom_call.1} parent=1 // pred_fallthru
      _
    %133 = vsyncpa [#allocation3], 1

</llo_original>
